<compile_context>
chip_gen: v7x
topology: tpu7x:2x2x1
jax: 0.10.0
libtpu: 0.0.40
codegen_flags: <defaults>
</compile_context>

<pallas_src>
import re
from functools import lru_cache

import jax
import jax.numpy as jnp
from jax.experimental import pallas as pl
from jax.experimental.pallas import tpu as pltpu


_LANE = 128
_FAST_PATH_MAX_ELEMS = 64 * 1024  # below this, XLA's fused elementwise wins


def _square_kernel(x_ref, o_ref):
    x = x_ref[...]
    o_ref[...] = x * x


def _round_up(a: int, m: int) -> int:
    return ((a + m - 1) // m) * m


@lru_cache(maxsize=1)
def _tpu_generation() -> int:
    """Best-effort TPU generation (5, 6, 7, ...) from device_kind; default 6."""
    try:
        kind = jax.devices()[0].device_kind.lower()
        m = re.search(r"(\d+)", kind)
        if m:
            return int(m.group(1))
    except Exception:
        pass
    return 6


def _chip_params(itemsize: int, sub: int):
    """Per-generation tiling: (num_tensorcores, default tile_rows, vmem cap)."""
    gen = _tpu_generation()
    if gen >= 7:
        # v7x: 2 TCs/chip, only 64 MiB VMEM, ~3.2 TB/s HBM -> big blocks,
        # VMEM limit capped well under physical.
        num_tc, block_bytes, vmem_cap = 2, 8 << 20, 48 << 20
    elif gen == 6:
        num_tc, block_bytes, vmem_cap = 1, 8 << 20, 96 << 20
    elif gen == 4:
        # v4 megacore: 2 TCs per device, 128 MiB VMEM.
        num_tc, block_bytes, vmem_cap = 2, 8 << 20, 96 << 20
    else:
        num_tc, block_bytes, vmem_cap = 1, 4 << 20, 96 << 20
    tile_rows = max(sub, (block_bytes // (_LANE * itemsize)) // sub * sub)
    return num_tc, tile_rows, vmem_cap


def square(x: jax.Array, *, tile_rows: int | None = None,
           force_kernel: bool = False) -> jax.Array:
    """Elementwise square via a Pallas TPU kernel. Matches jnp.square(x)."""
    orig_shape = x.shape
    dtype = x.dtype
    n = x.size
    if n == 0:
        return x
    # Tiny tensors: pallas_call launch / per-step overhead dominates.
    if not force_kernel and n < _FAST_PATH_MAX_ELEMS:
        return jnp.square(x)

    itemsize = dtype.itemsize
    # Sublane tiling depends on dtype width: f32 -> 8, bf16 -> 16, int8/fp8 -> 32.
    sub = max(8, 32 // max(1, itemsize))
    num_tc, auto_tile_rows, vmem_cap = _chip_params(itemsize, sub)
    if tile_rows is None:
        tile_rows = auto_tile_rows
    else:
        tile_rows = max(sub, (tile_rows // sub) * sub)

    # Kernel processes the lane-aligned prefix; any <128-element tail is
    # computed with plain jnp (avoids the old pad + trailing-slice HBM copies).
    n_main = (n // _LANE) * _LANE
    if n_main == 0:
        return jnp.square(x)

    x_flat = jnp.ravel(x)                      # bitcast for contiguous layouts
    x_main = x_flat if n_main == n else x_flat[:n_main]
    rows = n_main // _LANE
    x2d = x_main.reshape(rows, _LANE)          # lane-dense slab

    # Block rows: as big as allowed; split across TensorCores only when the
    # chip actually has >1 TC and each per-core block stays >= ~1 MiB.
    if rows <= sub:
        tr = rows                              # block == full array dims
    else:
        min_split_rows = _round_up(max(sub, (1 << 20) // (_LANE * itemsize)), sub)
        if num_tc > 1 and rows >= 2 * num_tc * min_split_rows:
            tr = min(tile_rows,
                     max(min_split_rows, _round_up(pl.cdiv(rows, 2 * num_tc), sub)))
        else:
            tr = min(tile_rows, _round_up(rows, sub))
    grid = (pl.cdiv(rows, tr),)                # last block may be partial (masked)

    # VMEM budget: in + out, double-buffered, plus headroom; capped per chip.
    block_bytes = tr * _LANE * itemsize
    vmem_limit = int(min(max(4 * block_bytes + (4 << 20), 16 << 20), vmem_cap))

    out2d = pl.pallas_call(
        _square_kernel,
        out_shape=jax.ShapeDtypeStruct((rows, _LANE), dtype),
        grid_spec=pltpu.PrefetchScalarGridSpec(
            num_scalar_prefetch=0,
            grid=grid,
            in_specs=[pl.BlockSpec((tr, _LANE), lambda i: (i, 0))],
            out_specs=pl.BlockSpec((tr, _LANE), lambda i: (i, 0)),
        ),
        compiler_params=pltpu.CompilerParams(
            dimension_semantics=("parallel",),
            vmem_limit_bytes=vmem_limit,
        ),
    )(x2d)

    out_main = out2d.reshape(-1)
    if n_main == n:
        return out_main.reshape(orig_shape)    # bitcast on the aligned fast path
    tail = jnp.square(x_flat[n_main:])
    return jnp.concatenate([out_main, tail]).reshape(orig_shape)


if __name__ == "__main__":
    key = jax.random.PRNGKey(0)
    k1, k2, k3, k4 = jax.random.split(key, 4)

    # 1) Shape implied by the module's usage: batch=2, channels=4, spatial=16x16.
    #    (force_kernel=True so the Pallas path is exercised despite the small n.)
    x = jax.random.normal(k1, (2, 4, 16, 16), dtype=jnp.float32)
    out = square(x, force_kernel=True)
    jax.block_until_ready(out)
    expected = jnp.square(x)
    assert out.shape == expected.shape, (out.shape, expected.shape)
    assert out.dtype == expected.dtype, (out.dtype, expected.dtype)
    assert jnp.allclose(out, expected), "mismatch vs jnp.square (aligned path)"

    # 2) Multi-step grid with a partial (masked) last block: rows=20, tile_rows=8.
    y = jax.random.normal(k2, (20, 128), dtype=jnp.float32)
    out_y = square(y, tile_rows=8, force_kernel=True)
    jax.block_until_ready(out_y)
    assert jnp.allclose(out_y, jnp.square(y)), "mismatch vs jnp.square (partial block)"

    # 3) Lane-misaligned flat size: aligned prefix via kernel + jnp tail.
    z = jax.random.normal(k3, (21, 100), dtype=jnp.float32)
    out_z = square(z, force_kernel=True)
    jax.block_until_ready(out_z)
    assert out_z.shape == z.shape
    assert jnp.allclose(out_z, jnp.square(z)), "mismatch vs jnp.square (prefix+tail)"

    # 4) Default policy: tiny input takes the jnp.square fast path.
    w = jax.random.normal(k4, (3, 5, 7), dtype=jnp.float32)
    out_w = square(w)
    jax.block_until_ready(out_w)
    assert jnp.allclose(out_w, jnp.square(w)), "mismatch vs jnp.square (fast path)"

    print("KERNEL_OK")
</pallas_src>

<mosaic_0001>
module attributes {stable_mosaic.version = 11 : i64} {
  func.func @_square_kernel(%arg0: i32, %arg1: memref<16x128xf32, #tpu.memory_space<vmem>>, %arg2: memref<16x128xf32, #tpu.memory_space<vmem>>) attributes {dimension_semantics = [#tpu.dimension_semantics<parallel>], iteration_bounds = array<i64: 1>, scalar_prefetch = 0 : i64, scratch_operands = 0 : i64, tpu.core_type = #tpu.core_type<tc>, window_params = [{transform_indices = @transform_0, window_bounds = array<i64: 16, 128>}, {transform_indices = @transform_1, window_bounds = array<i64: 16, 128>}]} {
    %c0 = arith.constant 0 : index
    %c0_0 = arith.constant 0 : index
    %0 = vector.load %arg1[%c0, %c0_0] : memref<16x128xf32, #tpu.memory_space<vmem>>, vector<16x128xf32>
    %1 = arith.mulf %0, %0 : vector<16x128xf32>
    %c0_1 = arith.constant 0 : index
    %c0_2 = arith.constant 0 : index
    %2 = vector.load %arg2[%c0_1, %c0_2] : memref<16x128xf32, #tpu.memory_space<vmem>>, vector<16x128xf32>
    tpu.vector_store %arg2[%c0_1, %c0_2], %1 {strides = array<i32>} : memref<16x128xf32, #tpu.memory_space<vmem>>, vector<16x128xf32>,
    return
  }
  func.func @transform_0(%arg0: i32) -> (i32, i32) {
    %c0_i32 = arith.constant 0 : i32
    %c0_i32_0 = arith.constant 0 : i32
    return %arg0, %c0_i32 : i32, i32
  }
  func.func @transform_1(%arg0: i32) -> (i32, i32) {
    %c0_i32 = arith.constant 0 : i32
    %c0_i32_0 = arith.constant 0 : i32
    return %arg0, %c0_i32 : i32, i32
  }
}

</mosaic_0001>

<llo_original>
// kernel: tpu_custom_call.1
$region0: #{tpu_custom_call.1}
  #allocation0 [shape = 'u32[]', space=smem, size = 0x4, offset = 0x4, fixed_abs, tag = 'smem constant byte address 0x4 - core index']
  #allocation1 [shape = 'u32[144,128]{1,0:T(1,128)}', space=vmem, size = 0x12000, scoped, tag = 'internal scratch']
  %s0 = inlined_call_operand.hbm [shape: f32[16,128], index: 0, kind: input, shape index: {}]
  %s1 = inlined_call_operand.hbm [shape: f32[16,128], index: 1, kind: output, shape index: {}]
  %s2 = sld [smem:[#allocation0]]
  $region18: #{tpu_custom_call.1} parent=0
    _
  %s4 = ssub.s32 1, %s2
  %s5 = scalar_select 0, %s4, %s2
  $region1: #{tpu_custom_call.1} parent=0
    #allocation2 [shape = 'u8[8192]{0}', space=vmem, size = 0x2000, scoped, tag = 'input window, operand 0, single buffered']
    #allocation3 [shape = 's32[1]{0}', space=sflag, size = 0x4, scoped, tag = 'scoped memory for tpu_custom_call.1']
    #allocation4 [shape = 's32[1]{0}', space=sflag, size = 0x4, scoped, tag = 'scoped memory for tpu_custom_call.1']
    #allocation5 [shape = 'u8[8192]{0}', space=vmem, size = 0x2000, scoped, tag = 'output window, operand 0, single buffered']
    %6 = vsyncpa [#allocation3], 0
    %7 = vsyncpa [#allocation4], 0
    // Predicated region
    $region2: #{tpu_custom_call.1} parent=1 // pred_check
      _
    $region3: #{tpu_custom_call.1} parent=1 // pred_check_branch
      %9 = sbr.rel (0) target = $region5
    $region4: #{tpu_custom_call.1} parent=1 // pred_region
      %s11 = ssub.s32 256, 256
      %12 = vsyncadd [#allocation3], %s11
      %s13 = sshll.u32 [#allocation2], 4
      %s14 = int_to_ptr.vmem [resolvable:$true] %s13
      %19 = dma.hbm_to_vmem [thread:$0]  %s0, 256, %s14, [#allocation3], 128, 128, 8
    $region5: #{tpu_custom_call.1} parent=1 // pred_fallthru
      _
    // Predicated region
    $region6: #{tpu_custom_call.1} parent=1 // pred_check
      _
    $region7: #{tpu_custom_call.1} parent=1 // pred_check_branch
      %21 = sbr.rel (0) target = $region9
    $region8: #{tpu_custom_call.1} parent=1 // pred_region
      %22 = dma.done [#allocation3], 256
    $region9: #{tpu_custom_call.1} parent=1 // pred_fallthru
      _
    %v23 = vld [vmem:[#allocation2] sm:$0xff]
    %v24 = vld [vmem:[#allocation2 + $0x8] sm:$0xff]
    %v25 = vmul.f32 %v23, %v23
    %v26 = vmul.f32 %v24, %v24
    %27 = vst [vmem:[#allocation5] sm:$0xff] %v25
    %28 = vst [vmem:[#allocation5 + $0x8] sm:$0xff] %v26
    // Predicated region
    $region10: #{tpu_custom_call.1} parent=1 // pred_check
      _
    $region11: #{tpu_custom_call.1} parent=1 // pred_check_branch
      %30 = sbr.rel (0) target = $region13
    $region12: #{tpu_custom_call.1} parent=1 // pred_region
      %s32 = ssub.s32 256, 256
      %33 = vsyncadd [#allocation4], %s32
      %s34 = sshll.u32 [#allocation5], 4
      %s35 = int_to_ptr.vmem [resolvable:$true] %s34
      %40 = dma.vmem_to_hbm [thread:$0]  %s35, 256, %s1, [#allocation4], 128, 128, 8
    $region13: #{tpu_custom_call.1} parent=1 // pred_fallthru
      _
    // Predicated region
    $region14: #{tpu_custom_call.1} parent=1 // pred_check
      _
    $region15: #{tpu_custom_call.1} parent=1 // pred_check_branch
      %42 = sbr.rel (0) target = $region17
    $region16: #{tpu_custom_call.1} parent=1 // pred_region
      %43 = dma.done [#allocation4], 256
    $region17: #{tpu_custom_call.1} parent=1 // pred_fallthru
      _
    %44 = vsyncpa [#allocation3], 1
    %45 = vsyncpa [#allocation4], 1

</llo_original>
